<compile_context>
chip_gen: v7x
topology: tpu7x:2x2x1
jax: 0.10.0
libtpu: 0.0.40
codegen_flags: <defaults>
</compile_context>

<pallas_src>
import functools

import jax
import jax.numpy as jnp
from jax.experimental import pallas as pl
from jax.experimental.pallas import tpu as pltpu

HIDDEN = 128   # hidden width of the Actor MLP (fixed by the module)
LANE = 128     # TPU lane width


def _round_up(n, m):
    return ((n + m - 1) // m) * m


def actor_kernel(action_size, x_ref, w1_ref, b1_ref, w2_ref, b2_ref, out_ref):
    # ----- Linear(obs -> 128) + LeakyReLU(0.01), f32 accumulation -----
    x = x_ref[...]                                        # bf16 (TB, obs)
    h = jnp.dot(x, w1_ref[...], preferred_element_type=jnp.float32) + b1_ref[...]
    h = jnp.maximum(h, 0.01 * h)                          # LeakyReLU, default slope

    # ----- Linear(128 -> act_padded) -----
    logits = jnp.dot(h.astype(w2_ref.dtype), w2_ref[...],
                     preferred_element_type=jnp.float32) + b2_ref[...]

    # Mask padded action lanes so softmax only covers the real actions.
    act_p = logits.shape[-1]
    if action_size < act_p:
        col = jax.lax.broadcasted_iota(jnp.int32, logits.shape, 1)
        logits = jnp.where(col < action_size, logits, -jnp.inf)

    # ----- Softmax over the action axis (numerically stable, f32) -----
    m = jnp.max(logits, axis=1, keepdims=True)
    e = jnp.exp(logits - m)                               # padded lanes -> exp(-inf) = 0
    denom = jnp.sum(e, axis=1, keepdims=True)
    out_ref[...] = (e * pl.reciprocal(denom, approx=True)).astype(out_ref.dtype)


def actor_forward(x, w1, b1, w2, b2, *, tb=1024):
    """x: (batch, obs) f32; w1: (obs, 128); b1: (128,)/(1,128); w2: (128, act); b2: (act,)/(1,act)."""
    batch, obs = x.shape
    action_size = w2.shape[1]
    act_p = _round_up(action_size, LANE)                  # lane-dense output slab

    # bf16 matmul inputs (halves x HBM bytes, feeds MXU at bf16 rate); biases stay f32.
    xb = x.astype(jnp.bfloat16)
    w1b = w1.astype(jnp.bfloat16)
    w2b = jnp.zeros((HIDDEN, act_p), jnp.bfloat16).at[:, :action_size].set(
        w2.astype(jnp.bfloat16))
    b1f = jnp.asarray(b1, jnp.float32).reshape(1, HIDDEN)
    b2f = jnp.zeros((1, act_p), jnp.float32).at[:, :action_size].set(
        jnp.asarray(b2, jnp.float32).reshape(1, action_size))

    # Batch tiling: multiple of 16 sublanes (bf16 packing); pad batch to a grid multiple.
    tb_eff = _round_up(min(tb, _round_up(batch, 16)), 16)
    padded_batch = _round_up(batch, tb_eff)
    if padded_batch != batch:
        xb = jnp.pad(xb, ((0, padded_batch - batch), (0, 0)))

    grid = (padded_batch // tb_eff,)
    out = pl.pallas_call(
        functools.partial(actor_kernel, action_size),
        out_shape=jax.ShapeDtypeStruct((padded_batch, act_p), jnp.float32),
        grid=grid,
        in_specs=[
            pl.BlockSpec((tb_eff, obs), lambda i: (i, 0)),       # x tile, pipelined
            pl.BlockSpec((obs, HIDDEN), lambda i: (0, 0)),       # weights: VMEM-resident
            pl.BlockSpec((1, HIDDEN), lambda i: (0, 0)),
            pl.BlockSpec((HIDDEN, act_p), lambda i: (0, 0)),
            pl.BlockSpec((1, act_p), lambda i: (0, 0)),
        ],
        out_specs=pl.BlockSpec((tb_eff, act_p), lambda i: (i, 0)),
        compiler_params=pltpu.CompilerParams(dimension_semantics=("parallel",)),
    )(xb, w1b, b1f, w2b, b2f)

    return out[:batch, :action_size]


def init_actor_params(key, observation_size, action_size, hidden=HIDDEN):
    # Mimics PyTorch Linear default init: uniform(-1/sqrt(fan_in), 1/sqrt(fan_in)).
    k1, k2, k3, k4 = jax.random.split(key, 4)
    bound1 = 1.0 / jnp.sqrt(observation_size)
    bound2 = 1.0 / jnp.sqrt(hidden)
    w1 = jax.random.uniform(k1, (observation_size, hidden), jnp.float32, -bound1, bound1)
    b1 = jax.random.uniform(k2, (1, hidden), jnp.float32, -bound1, bound1)
    w2 = jax.random.uniform(k3, (hidden, action_size), jnp.float32, -bound2, bound2)
    b2 = jax.random.uniform(k4, (1, action_size), jnp.float32, -bound2, bound2)
    return w1, b1, w2, b2


if __name__ == "__main__":
    observation_size = 32
    action_size = 8
    batch = 8

    key = jax.random.PRNGKey(0)
    kx, kp = jax.random.split(key)
    x = jax.random.normal(kx, (batch, observation_size), jnp.float32)
    w1, b1, w2, b2 = init_actor_params(kp, observation_size, action_size)

    out = jax.block_until_ready(actor_forward(x, w1, b1, w2, b2))

    # Pure-JAX reference with the same bf16-input / f32-accumulate math.
    xb = x.astype(jnp.bfloat16)
    w1b = w1.astype(jnp.bfloat16)
    w2b = w2.astype(jnp.bfloat16)
    h_ref = jnp.dot(xb, w1b, preferred_element_type=jnp.float32) + b1
    h_ref = jnp.maximum(h_ref, 0.01 * h_ref)
    logits_ref = jnp.dot(h_ref.astype(jnp.bfloat16), w2b,
                         preferred_element_type=jnp.float32) + b2
    ref = jax.nn.softmax(logits_ref, axis=1)

    assert out.shape == (batch, action_size)
    assert jnp.allclose(out, ref, atol=5e-3), "mismatch vs reference"
    assert jnp.allclose(jnp.sum(out, axis=1), 1.0, atol=5e-3)

    print("KERNEL_OK")
</pallas_src>

<mosaic_0001>
module attributes {stable_mosaic.version = 11 : i64} {
  func.func @actor_kernel(%arg0: i32, %arg1: memref<16x32xbf16, #tpu.memory_space<vmem>>, %arg2: memref<32x128xbf16, #tpu.memory_space<vmem>>, %arg3: memref<1x128xf32, #tpu.memory_space<vmem>>, %arg4: memref<128x128xbf16, #tpu.memory_space<vmem>>, %arg5: memref<1x128xf32, #tpu.memory_space<vmem>>, %arg6: memref<16x128xf32, #tpu.memory_space<vmem>>) attributes {dimension_semantics = [#tpu.dimension_semantics<parallel>], iteration_bounds = array<i64: 1>, scalar_prefetch = 0 : i64, scratch_operands = 0 : i64, tpu.core_type = #tpu.core_type<tc>, window_params = [{transform_indices = @transform_0, window_bounds = array<i64: 16, 32>}, {pipeline_mode = #tpu.pipeline_mode<synchronous>, transform_indices = @transform_1, window_bounds = array<i64: 32, 128>}, {pipeline_mode = #tpu.pipeline_mode<synchronous>, transform_indices = @transform_2, window_bounds = array<i64: 1, 128>}, {pipeline_mode = #tpu.pipeline_mode<synchronous>, transform_indices = @transform_3, window_bounds = array<i64: 128, 128>}, {pipeline_mode = #tpu.pipeline_mode<synchronous>, transform_indices = @transform_4, window_bounds = array<i64: 1, 128>}, {transform_indices = @transform_5, window_bounds = array<i64: 16, 128>}]} {
    %c0 = arith.constant 0 : index
    %c0_0 = arith.constant 0 : index
    %0 = vector.load %arg1[%c0, %c0_0] : memref<16x32xbf16, #tpu.memory_space<vmem>>, vector<16x32xbf16>
    %c0_1 = arith.constant 0 : index
    %c0_2 = arith.constant 0 : index
    %1 = vector.load %arg2[%c0_1, %c0_2] : memref<32x128xbf16, #tpu.memory_space<vmem>>, vector<32x128xbf16>
    %cst = arith.constant dense<0.000000e+00> : vector<16x128xf32>
    %2 = tpu.matmul %0, %1, %cst {dimension_numbers = #tpu.dot_dimension_numbers<[1], [0], [0], [1], [0, 0, 1, 1], [], []>} : vector<16x32xbf16>, vector<32x128xbf16>, vector<16x128xf32> -> vector<16x128xf32>
    %c0_3 = arith.constant 0 : index
    %c0_4 = arith.constant 0 : index
    %3 = vector.load %arg3[%c0_3, %c0_4] : memref<1x128xf32, #tpu.memory_space<vmem>>, vector<1x128xf32>
    %4 = vector.broadcast %3 : vector<1x128xf32> to vector<16x128xf32>
    %5 = arith.addf %2, %4 : vector<16x128xf32>
    %cst_5 = arith.constant 0.00999999977 : f32
    %6 = vector.broadcast %cst_5 : f32 to vector<16x128xf32>
    %7 = arith.mulf %6, %5 : vector<16x128xf32>
    %8 = arith.maximumf %5, %7 : vector<16x128xf32>
    %9 = arith.truncf %8 : vector<16x128xf32> to vector<16x128xbf16>
    %c0_6 = arith.constant 0 : index
    %c0_7 = arith.constant 0 : index
    %10 = vector.load %arg4[%c0_6, %c0_7] : memref<128x128xbf16, #tpu.memory_space<vmem>>, vector<128x128xbf16>
    %cst_8 = arith.constant dense<0.000000e+00> : vector<16x128xf32>
    %11 = tpu.matmul %9, %10, %cst_8 {dimension_numbers = #tpu.dot_dimension_numbers<[1], [0], [0], [1], [0, 0, 1, 1], [], []>} : vector<16x128xbf16>, vector<128x128xbf16>, vector<16x128xf32> -> vector<16x128xf32>
    %c0_9 = arith.constant 0 : index
    %c0_10 = arith.constant 0 : index
    %12 = vector.load %arg5[%c0_9, %c0_10] : memref<1x128xf32, #tpu.memory_space<vmem>>, vector<1x128xf32>
    %13 = vector.broadcast %12 : vector<1x128xf32> to vector<16x128xf32>
    %14 = arith.addf %11, %13 : vector<16x128xf32>
    %15 = tpu.iota {dimensions = array<i32: 1>} : vector<16x128xi32>
    %c8_i32 = arith.constant 8 : i32
    %16 = vector.broadcast %c8_i32 : i32 to vector<16x128xi32>
    %17 = arith.cmpi slt, %15, %16 : vector<16x128xi32>
    %cst_11 = arith.constant 0xFF800000 : f32
    %18 = vector.broadcast %cst_11 : f32 to vector<16x128xf32>
    %19 = arith.select %17, %14, %18 : vector<16x128xi1>, vector<16x128xf32>
    %cst_12 = arith.constant dense<0xFF800000> : vector<16xf32>
    %20 = vector.multi_reduction <maximumf>, %19, %cst_12 [1] : vector<16x128xf32> to vector<16xf32>
    %21 = vector.shape_cast %20 : vector<16xf32> to vector<16x1xf32>
    %22 = vector.broadcast %21 : vector<16x1xf32> to vector<16x128xf32>
    %23 = arith.subf %19, %22 : vector<16x128xf32>
    %24 = math.exp %23 : vector<16x128xf32>
    %cst_13 = arith.constant dense<0.000000e+00> : vector<16xf32>
    %25 = vector.multi_reduction <add>, %24, %cst_13 [1] : vector<16x128xf32> to vector<16xf32>
    %26 = vector.shape_cast %25 : vector<16xf32> to vector<16x1xf32>
    %27 = tpu.reciprocal %26 {approx = true} : vector<16x1xf32> -> vector<16x1xf32>
    %28 = vector.broadcast %27 : vector<16x1xf32> to vector<16x128xf32>
    %29 = arith.mulf %24, %28 : vector<16x128xf32>
    %c0_14 = arith.constant 0 : index
    %c0_15 = arith.constant 0 : index
    %30 = vector.load %arg6[%c0_14, %c0_15] : memref<16x128xf32, #tpu.memory_space<vmem>>, vector<16x128xf32>
    tpu.vector_store %arg6[%c0_14, %c0_15], %29 {strides = array<i32>} : memref<16x128xf32, #tpu.memory_space<vmem>>, vector<16x128xf32>,
    return
  }
  func.func @transform_0(%arg0: i32) -> (i32, i32) {
    %c0_i32 = arith.constant 0 : i32
    %c0_i32_0 = arith.constant 0 : i32
    return %arg0, %c0_i32 : i32, i32
  }
  func.func @transform_1(%arg0: i32) -> (i32, i32) {
    %c0_i32 = arith.constant 0 : i32
    %c0_i32_0 = arith.constant 0 : i32
    %c0_i32_1 = arith.constant 0 : i32
    return %c0_i32, %c0_i32_0 : i32, i32
  }
  func.func @transform_2(%arg0: i32) -> (i32, i32) {
    %c0_i32 = arith.constant 0 : i32
    %c0_i32_0 = arith.constant 0 : i32
    %c0_i32_1 = arith.constant 0 : i32
    return %c0_i32, %c0_i32_0 : i32, i32
  }
  func.func @transform_3(%arg0: i32) -> (i32, i32) {
    %c0_i32 = arith.constant 0 : i32
    %c0_i32_0 = arith.constant 0 : i32
    %c0_i32_1 = arith.constant 0 : i32
    return %c0_i32, %c0_i32_0 : i32, i32
  }
  func.func @transform_4(%arg0: i32) -> (i32, i32) {
    %c0_i32 = arith.constant 0 : i32
    %c0_i32_0 = arith.constant 0 : i32
    %c0_i32_1 = arith.constant 0 : i32
    return %c0_i32, %c0_i32_0 : i32, i32
  }
  func.func @transform_5(%arg0: i32) -> (i32, i32) {
    %c0_i32 = arith.constant 0 : i32
    %c0_i32_0 = arith.constant 0 : i32
    return %arg0, %c0_i32 : i32, i32
  }
}

</mosaic_0001>

<llo_original>
// kernel: tpu_custom_call.1
$region0: #{tpu_custom_call.1}
  #allocation0 [shape = 'u32[]', space=smem, size = 0x4, offset = 0x4, fixed_abs, tag = 'smem constant byte address 0x4 - core index']
  #allocation1 [shape = 'u32[144,128]{1,0:T(1,128)}', space=vmem, size = 0x12000, scoped, tag = 'internal scratch']
  %s0 = inlined_call_operand.hbm [shape: bf16[16,32], index: 0, kind: input, shape index: {}]
  %s1 = inlined_call_operand.hbm [shape: bf16[32,128], index: 1, kind: input, shape index: {}]
  %s2 = inlined_call_operand.vmem [shape: f32[1,128], index: 2, kind: input, shape index: {}]
  %s3 = inlined_call_operand.hbm [shape: bf16[128,128], index: 3, kind: input, shape index: {}]
  %s4 = inlined_call_operand.vmem [shape: f32[1,128], index: 4, kind: input, shape index: {}]
  %s5 = inlined_call_operand.hbm [shape: f32[16,128], index: 5, kind: output, shape index: {}]
  %s6 = sld [smem:[#allocation0]]
  $region42: #{tpu_custom_call.1} parent=0
    _
  %s8 = ssub.s32 1, %s6
  %s9 = scalar_select 0, %s8, %s6
  $region1: #{tpu_custom_call.1} parent=0
    #allocation2 [shape = 'u8[4096]{0}', space=vmem, size = 0x1000, scoped, tag = 'input window, operand 0, single buffered']
    #allocation3 [shape = 's32[1]{0}', space=sflag, size = 0x4, scoped, tag = 'scoped memory for tpu_custom_call.1']
    #allocation4 [shape = 's32[1]{0}', space=sflag, size = 0x4, scoped, tag = 'scoped memory for tpu_custom_call.1']
    #allocation5 [shape = 'u8[8192]{0}', space=vmem, size = 0x2000, scoped, tag = 'input window, operand 1, single buffered']
    #allocation6 [shape = 's32[1]{0}', space=sflag, size = 0x4, scoped, tag = 'scoped memory for tpu_custom_call.1']
    #allocation7 [shape = 'u8[32768]{0}', space=vmem, size = 0x8000, scoped, tag = 'input window, operand 3, single buffered']
    #allocation8 [shape = 'u8[8192]{0}', space=vmem, size = 0x2000, scoped, tag = 'output window, operand 0, single buffered']
    %10 = vsyncpa [#allocation3], 0
    %11 = vsyncpa [#allocation6], 0
    %12 = vsyncpa [#allocation4], 0
    // Predicated region
    $region2: #{tpu_custom_call.1} parent=1 // pred_check
      _
    $region3: #{tpu_custom_call.1} parent=1 // pred_check_branch
      %14 = sbr.rel (0) target = $region5
    $region4: #{tpu_custom_call.1} parent=1 // pred_region
      %s16 = ssub.s32 128, 128
      %17 = vsyncadd [#allocation3], %s16
      %s18 = sshll.u32 [#allocation2], 4
      %s19 = int_to_ptr.vmem [resolvable:$true] %s18
      %24 = dma.hbm_to_vmem [thread:$0]  %s0, 128, %s19, [#allocation3], 64, 64, 4
    $region5: #{tpu_custom_call.1} parent=1 // pred_fallthru
      _
    // Predicated region
    $region6: #{tpu_custom_call.1} parent=1 // pred_check
      _
    $region7: #{tpu_custom_call.1} parent=1 // pred_check_branch
      %26 = sbr.rel (0) target = $region9
    $region8: #{tpu_custom_call.1} parent=1 // pred_region
      %s28 = ssub.s32 256, 256
      %29 = vsyncadd [#allocation6], %s28
      %s30 = sshll.u32 [#allocation5], 4
      %s31 = int_to_ptr.vmem [resolvable:$true] %s30
      %36 = dma.hbm_to_vmem [thread:$0]  %s1, 256, %s31, [#allocation6], 64, 64, 4
    $region9: #{tpu_custom_call.1} parent=1 // pred_fallthru
      _
    // Predicated region
    $region10: #{tpu_custom_call.1} parent=1 // pred_check
      _
    $region11: #{tpu_custom_call.1} parent=1 // pred_check_branch
      %38 = sbr.rel (0) target = $region13
    $region12: #{tpu_custom_call.1} parent=1 // pred_region
      _
    $region13: #{tpu_custom_call.1} parent=1 // pred_fallthru
      _
    // Predicated region
    $region14: #{tpu_custom_call.1} parent=1 // pred_check
      _
    $region15: #{tpu_custom_call.1} parent=1 // pred_check_branch
      %40 = sbr.rel (0) target = $region17
    $region16: #{tpu_custom_call.1} parent=1 // pred_region
      %s42 = ssub.s32 1024, 1024
      %43 = vsyncadd [#allocation6], %s42
      %s44 = sshll.u32 [#allocation7], 4
      %s45 = int_to_ptr.vmem [resolvable:$true] %s44
      %50 = dma.hbm_to_vmem [thread:$0]  %s3, 1024, %s45, [#allocation6], 64, 64, 4
    $region17: #{tpu_custom_call.1} parent=1 // pred_fallthru
      _
    // Predicated region
    $region18: #{tpu_custom_call.1} parent=1 // pred_check
      _
    $region19: #{tpu_custom_call.1} parent=1 // pred_check_branch
      %52 = sbr.rel (0) target = $region21
    $region20: #{tpu_custom_call.1} parent=1 // pred_region
      _
    $region21: #{tpu_custom_call.1} parent=1 // pred_fallthru
      _
    // Predicated region
    $region22: #{tpu_custom_call.1} parent=1 // pred_check
      _
    $region23: #{tpu_custom_call.1} parent=1 // pred_check_branch
      %54 = sbr.rel (0) target = $region25
    $region24: #{tpu_custom_call.1} parent=1 // pred_region
      %55 = dma.done [#allocation3], 128
    $region25: #{tpu_custom_call.1} parent=1 // pred_fallthru
      _
    // Predicated region
    $region26: #{tpu_custom_call.1} parent=1 // pred_check
      _
    $region27: #{tpu_custom_call.1} parent=1 // pred_check_branch
      %57 = sbr.rel (0) target = $region29
    $region28: #{tpu_custom_call.1} parent=1 // pred_region
      %58 = dma.done [#allocation6], 256
    $region29: #{tpu_custom_call.1} parent=1 // pred_fallthru
      _
    // Predicated region
    $region30: #{tpu_custom_call.1} parent=1 // pred_check
      _
    $region31: #{tpu_custom_call.1} parent=1 // pred_check_branch
      %60 = sbr.rel (0) target = $region33
    $region32: #{tpu_custom_call.1} parent=1 // pred_region
      %61 = dma.done [#allocation6], 1024
    $region33: #{tpu_custom_call.1} parent=1 // pred_fallthru
      _
    %v63 = vld [vmem:[#allocation2] sm:$0xf]
    %v64 = vld [vmem:[#allocation2 + $0x4] sm:$0xf]
    %v65 = vld [vmem:[#allocation5] sm:$0xf]
    %v66 = vld [vmem:[#allocation5 + $0x4] sm:$0xf]
    %v67 = vld [vmem:[#allocation5 + $0x8] sm:$0xf]
    %v68 = vld [vmem:[#allocation5 + $0xc] sm:$0xf]
    %v69 = vld [vmem:[%s2] sm:$0x1]
    %v71 = vlaneseq
    %v72 = vshrl.u32 %v71, 7
    %v73 = vsub.s32 0, %v72
    %v74 = vrot.slane %v69, %v73
    %v78 = vunpack.c.l.b16 %v63
    %v79 = vunpack.c.l.b16 %v64
    %v80 = vpack.c.b16 %v79, %v78
    %v85 = vunpack.c.l.b16 %v65
    %v86 = vunpack.c.l.b16 %v66
    %v87 = vunpack.c.l.b16 %v67
    %v88 = vunpack.c.l.b16 %v68
    %v89 = vpack.c.b16 %v86, %v85
    %v90 = vpack.c.b16 %v88, %v87
    %vm93 = vcmask 261120
    %v95 = vsel %vm93, %v80, 0
    %97 = vmatprep.subr.bf16.mxu0 0
    %98 = vmatpush1.bf16.msra.mxu0 %v89
    %99 = vmatprep.subr.bf16.mxu0 0
    %100 = vmatpush1.bf16.msra.mxu0 %v90
    %101 = vmatprep.subr.bf16.mxu0 0
    %102 = vmatpush1.bf16.msra.mxu0 0
    %103 = vmatprep.subr.bf16.mxu0 0
    %104 = vmatpush1.bf16.msra.mxu0 0
    %105 = vmatprep.subr.bf16.mxu0 0
    %106 = vmatpush1.bf16.msra.mxu0 0
    %107 = vmatprep.subr.bf16.mxu0 0
    %108 = vmatpush1.bf16.msra.mxu0 0
    %109 = vmatprep.subr.bf16.mxu0 0
    %110 = vmatpush1.bf16.msra.mxu0 0
    %111 = vmatprep.subr.bf16.mxu0 0
    %112 = vmatpush1.bf16.msra.mxu0 0
    %113 = vmatprep.subr.bf16.mxu0 0
    %114 = vmatpush1.bf16.msra.mxu0 0
    %115 = vmatprep.subr.bf16.mxu0 0
    %116 = vmatpush1.bf16.msra.mxu0 0
    %117 = vmatprep.subr.bf16.mxu0 0
    %118 = vmatpush1.bf16.msra.mxu0 0
    %119 = vmatprep.subr.bf16.mxu0 0
    %120 = vmatpush1.bf16.msra.mxu0 0
    %121 = vmatprep.subr.bf16.mxu0 0
    %122 = vmatpush1.bf16.msra.mxu0 0
    %123 = vmatprep.subr.bf16.mxu0 0
    %124 = vmatpush1.bf16.msra.mxu0 0
    %125 = vmatprep.subr.bf16.mxu0 0
    %126 = vmatpush1.bf16.msra.mxu0 0
    %127 = vmatprep.subr.bf16.mxu0 0
    %128 = vmatpush1.bf16.msra.mxu0 0
    %129 = vmatprep.mubr.bf16.mxu0 0
    %130 = vmatmul.mubr.bf16.gmra.mrb[0].mxu0 %v95
    %v131 = vpop.f32.mrb[0].mxu0
    %v132 = vadd.f32 %v74, %v131
    %v133 = vpop.f32.mrb[0].mxu0
    %v134 = vpop.f32.mrb[0].mxu0
    %v135 = vadd.f32 %v74, %v134
    %v136 = vpop.f32.mrb[0].mxu0
    %137 = vdwg.mxu0
    %v138 = vmul.f32 %v132, 0.01
    %v139 = vmul.f32 %v135, 0.01
    %v140 = vmax.f32 %v132, %v138
    %v141 = vmax.f32 %v135, %v139
    %v142 = vpack.c.bf16 %v141, %v140
    %v143 = vld [vmem:[#allocation7] sm:$0xf]
    %v144 = vld [vmem:[#allocation7 + $0x4] sm:$0xf]
    %v145 = vld [vmem:[#allocation7 + $0x8] sm:$0xf]
    %v146 = vld [vmem:[#allocation7 + $0xc] sm:$0xf]
    %v147 = vld [vmem:[#allocation7 + $0x10] sm:$0xf]
    %v148 = vld [vmem:[#allocation7 + $0x14] sm:$0xf]
    %v149 = vld [vmem:[#allocation7 + $0x18] sm:$0xf]
    %v150 = vld [vmem:[#allocation7 + $0x1c] sm:$0xf]
    %v151 = vld [vmem:[#allocation7 + $0x20] sm:$0xf]
    %v152 = vld [vmem:[#allocation7 + $0x24] sm:$0xf]
    %v153 = vld [vmem:[#allocation7 + $0x28] sm:$0xf]
    %v154 = vld [vmem:[#allocation7 + $0x2c] sm:$0xf]
    %v155 = vld [vmem:[#allocation7 + $0x30] sm:$0xf]
    %v156 = vld [vmem:[#allocation7 + $0x34] sm:$0xf]
    %v157 = vld [vmem:[#allocation7 + $0x38] sm:$0xf]
    %v158 = vld [vmem:[#allocation7 + $0x3c] sm:$0xf]
    %v159 = vld [vmem:[%s4] sm:$0x1]
    %v161 = vlaneseq
    %v162 = vshrl.u32 %v161, 7
    %v163 = vsub.s32 0, %v162
    %v164 = vrot.slane %v159, %v163
    %v182 = vunpack.c.l.b16 %v143
    %v183 = vunpack.c.l.b16 %v144
    %v184 = vunpack.c.l.b16 %v145
    %v185 = vunpack.c.l.b16 %v146
    %v186 = vunpack.c.l.b16 %v147
    %v187 = vunpack.c.l.b16 %v148
    %v188 = vunpack.c.l.b16 %v149
    %v189 = vunpack.c.l.b16 %v150
    %v190 = vunpack.c.l.b16 %v151
    %v191 = vunpack.c.l.b16 %v152
    %v192 = vunpack.c.l.b16 %v153
    %v193 = vunpack.c.l.b16 %v154
    %v194 = vunpack.c.l.b16 %v155
    %v195 = vunpack.c.l.b16 %v156
    %v196 = vunpack.c.l.b16 %v157
    %v197 = vunpack.c.l.b16 %v158
    %v198 = vpack.c.b16 %v183, %v182
    %v199 = vpack.c.b16 %v185, %v184
    %v200 = vpack.c.b16 %v187, %v186
    %v201 = vpack.c.b16 %v189, %v188
    %v202 = vpack.c.b16 %v191, %v190
    %v203 = vpack.c.b16 %v193, %v192
    %v204 = vpack.c.b16 %v195, %v194
    %v205 = vpack.c.b16 %v197, %v196
    %214 = vmatprep.subr.bf16.mxu0 0
    %215 = vmatpush1.bf16.msra.mxu0 %v198
    %216 = vmatprep.subr.bf16.mxu0 0
    %217 = vmatpush1.bf16.msra.mxu0 %v199
    %218 = vmatprep.subr.bf16.mxu0 0
    %219 = vmatpush1.bf16.msra.mxu0 %v200
    %220 = vmatprep.subr.bf16.mxu0 0
    %221 = vmatpush1.bf16.msra.mxu0 %v201
    %222 = vmatprep.subr.bf16.mxu0 0
    %223 = vmatpush1.bf16.msra.mxu0 %v202
    %224 = vmatprep.subr.bf16.mxu0 0
    %225 = vmatpush1.bf16.msra.mxu0 %v203
    %226 = vmatprep.subr.bf16.mxu0 0
    %227 = vmatpush1.bf16.msra.mxu0 %v204
    %228 = vmatprep.subr.bf16.mxu0 0
    %229 = vmatpush1.bf16.msra.mxu0 %v205
    %230 = vmatprep.subr.bf16.mxu0 0
    %231 = vmatpush1.bf16.msra.mxu0 0
    %232 = vmatprep.subr.bf16.mxu0 0
    %233 = vmatpush1.bf16.msra.mxu0 0
    %234 = vmatprep.subr.bf16.mxu0 0
    %235 = vmatpush1.bf16.msra.mxu0 0
    %236 = vmatprep.subr.bf16.mxu0 0
    %237 = vmatpush1.bf16.msra.mxu0 0
    %238 = vmatprep.subr.bf16.mxu0 0
    %239 = vmatpush1.bf16.msra.mxu0 0
    %240 = vmatprep.subr.bf16.mxu0 0
    %241 = vmatpush1.bf16.msra.mxu0 0
    %242 = vmatprep.subr.bf16.mxu0 0
    %243 = vmatpush1.bf16.msra.mxu0 0
    %244 = vmatprep.subr.bf16.mxu0 0
    %245 = vmatpush1.bf16.msra.mxu0 0
    %246 = vmatprep.mubr.bf16.mxu0 0
    %247 = vmatmul.mubr.bf16.gmra.mrb[0].mxu0 %v142
    %v248 = vpop.f32.mrb[0].mxu0
    %v249 = vadd.f32 %v164, %v248
    %v250 = vpop.f32.mrb[0].mxu0
    %v251 = vpop.f32.mrb[0].mxu0
    %v252 = vadd.f32 %v164, %v251
    %v253 = vpop.f32.mrb[0].mxu0
    %254 = vdwg.mxu0
    %v255 = vlaneseq
    %v256 = vand.u32 %v255, 127
    %vm257 = vcmp.lt.s32.totalorder %v256, 8
    %v258 = vsel %vm257, %v249, -inf
    %v259 = vsel %vm257, %v252, -inf
    %260 = vmax.xlane.f32.xlu0 %v258
    %v261 = vpop.xlane.xlu0 %260
    %262 = vmax.xlane.f32.xlu0 %v259
    %v263 = vpop.xlane.xlu0 %262
    %v264 = vsub.f32 %v258, %v261
    %v265 = vsub.f32 %v259, %v263
    %v266 = vmul.f32 %v264, 1.442695
    %v267 = vpow.pop %v266
    %v268 = vmul.f32 %v265, 1.442695
    %v269 = vpow.pop %v268
    %270 = vadd.xlane.f32.xlu0 %v267
    %v271 = vpop.xlane.xlu0 %270
    %272 = vadd.xlane.f32.xlu0 %v269
    %v273 = vpop.xlane.xlu0 %272
    %v274 = vrcp.pop %v271
    %v275 = vrcp.pop %v273
    %v276 = vmul.f32 %v267, %v274
    %v277 = vmul.f32 %v269, %v275
    %278 = vst [vmem:[#allocation8] sm:$0xff] %v276
    %279 = vst [vmem:[#allocation8 + $0x8] sm:$0xff] %v277
    // Predicated region
    $region34: #{tpu_custom_call.1} parent=1 // pred_check
      _
    $region35: #{tpu_custom_call.1} parent=1 // pred_check_branch
      %281 = sbr.rel (0) target = $region37
    $region36: #{tpu_custom_call.1} parent=1 // pred_region
      %s283 = ssub.s32 256, 256
      %284 = vsyncadd [#allocation4], %s283
      %s285 = sshll.u32 [#allocation8], 4
      %s286 = int_to_ptr.vmem [resolvable:$true] %s285
      %291 = dma.vmem_to_hbm [thread:$0]  %s286, 256, %s5, [#allocation4], 128, 128, 8
    $region37: #{tpu_custom_call.1} parent=1 // pred_fallthru
      _
    // Predicated region
    $region38: #{tpu_custom_call.1} parent=1 // pred_check
      _
    $region39: #{tpu_custom_call.1} parent=1 // pred_check_branch
      %293 = sbr.rel (0) target = $region41
    $region40: #{tpu_custom_call.1} parent=1 // pred_region
      %294 = dma.done [#allocation4], 256
    $region41: #{tpu_custom_call.1} parent=1 // pred_fallthru
      _
    %295 = vsyncpa [#allocation3], 1
    %296 = vsyncpa [#allocation6], 1
    %297 = vsyncpa [#allocation4], 1

</llo_original>
